<compile_context>
chip_gen: v7x
topology: tpu7x:2x2x1
jax: 0.10.0
libtpu: 0.0.40
codegen_flags: <defaults>
</compile_context>

<pallas_src>
import functools

import jax
import jax.numpy as jnp
from jax import lax
from jax.experimental import pallas as pl
from jax.experimental.pallas import tpu as pltpu

EPS = 1e-5
# bf16 matmul inputs / intermediate activations (f32 accumulation + f32 BN math).
# Set to jnp.float32 for bit-tight numeric checks; block_forward also takes it as arg.
MATMUL_DTYPE = jnp.bfloat16


def _vmem_limit_bytes():
    """Per-generation scoped VMEM limit: ~3/4 of physical (48 MiB on v7x's 64 MiB,
    96 MiB on v5e/v6e's 128 MiB)."""
    try:
        cap = int(pltpu.get_tpu_info().vmem_capacity_bytes)
    except Exception:
        cap = 64 * 1024 * 1024          # conservative default (v7x per-TC VMEM)
    return int(min(cap * 3 // 4, 96 * 1024 * 1024))


VMEM_LIMIT_BYTES = _vmem_limit_bytes()
TILE_BYTES_BUDGET = VMEM_LIMIT_BYTES // 2   # budget for the double-buffered activation tiles


def _cparams(n_axes=1):
    return pltpu.CompilerParams(
        dimension_semantics=("parallel",) * n_axes,
        vmem_limit_bytes=VMEM_LIMIT_BYTES)


def _pick_tile(m, bytes_per_row):
    """Largest divisor of m (preferring multiples of 16 for bf16 sublane packing)
    whose double-buffered tile fits the per-generation VMEM budget; capped at 2048
    rows (measured 512-2048 reaches ~85%+ of HBM roofline)."""
    target = int(TILE_BYTES_BUDGET // max(int(bytes_per_row), 1))
    target = max(256, min(2048, target))
    if m <= target:
        return m
    for step in (16, 8):
        start = target - target % step
        for t in range(start, step - 1, -step):
            if m % t == 0:
                return t
    # TODO(synk): ragged M (no divisor <= target) falls back to one untiled step;
    # a cdiv grid with a masked partial tile would keep pipelining for such shapes.
    return m


def _pick_row_tile(hout, bytes_per_out_row):
    """Output-row tile for the 3x3 conv: fits the VMEM budget and, when possible,
    yields >=2 tiles per image so both v7x TensorCores / the DMA pipeline have work."""
    target = int(TILE_BYTES_BUDGET // max(int(bytes_per_out_row), 1))
    target = max(1, min(target, hout))
    if hout >= 2:
        target = min(target, max(1, hout // 2))
    for t in range(target, 0, -1):
        if hout % t == 0:
            return t
    return hout


# ----------------------------- Pallas kernels ------------------------------ #

def _bn_params(st_ref, count):
    """mean and rsqrt(var+eps) from global [sum; sumsq] rows (f32, clamped variance)."""
    inv_n = 1.0 / count
    mean = st_ref[0:1, :] * inv_n
    var = jnp.maximum(st_ref[1:2, :] * inv_n - mean * mean, 0.0)
    return mean, lax.rsqrt(var + EPS)


def _matmul_stats_kernel(x_ref, w_ref, y_ref, ps_ref):
    """y = x @ w (f32 accumulate); emit per-tile [sum(y); sum(y*y)] for two-pass BN."""
    y = jnp.dot(x_ref[...].astype(w_ref.dtype), w_ref[...],
                preferred_element_type=jnp.float32)
    y_ref[...] = y.astype(y_ref.dtype)
    ps_ref[0, 0:1, :] = jnp.sum(y, axis=0, keepdims=True)
    ps_ref[0, 1:2, :] = jnp.sum(y * y, axis=0, keepdims=True)


def _conv3x3_stats_kernel(xt_ref, w_ref, y_ref, ps_ref, *, stride, th, Wout):
    """3x3 conv over one halo'd output-row tile: 9 MXU matmuls over shifted
    contiguous windows of the padded, phase-split input, accumulated in vregs
    (no VMEM scratch round trips); also emits BN2 partial stats."""
    C = w_ref.shape[1]
    acc = None
    for kh in range(3):
        for kw in range(3):
            rh, qh = kh % stride, kh // stride
            rw, qw = kw % stride, kw // stride
            # TODO(synk): the reshape below may relayout when (Wout, C) is not
            # (8,128)-aligned; with real channel counts (C>=128) it is cheap.
            patch = xt_ref[0, rh, pl.ds(qh, th), rw, pl.ds(qw, Wout), :]
            contrib = jnp.dot(patch.reshape(th * Wout, C), w_ref[kh * 3 + kw],
                              preferred_element_type=jnp.float32)
            acc = contrib if acc is None else acc + contrib
    y_ref[...] = acc[None].astype(y_ref.dtype)
    ps_ref[0, 0:1, :] = jnp.sum(acc, axis=0, keepdims=True)
    ps_ref[0, 1:2, :] = jnp.sum(acc * acc, axis=0, keepdims=True)


def _bn_act_matmul_stats_kernel(y_ref, st_ref, g_ref, b_ref, w_ref, o_ref, ps_ref, *, count):
    """Fused: BN2-normalize + ReLU + conv3 (1x1) + BN3 partial stats."""
    mean, rstd = _bn_params(st_ref, count)
    h = jnp.maximum((y_ref[...].astype(jnp.float32) - mean) * rstd * g_ref[...] + b_ref[...],
                    0.0)
    y3 = jnp.dot(h.astype(w_ref.dtype), w_ref[...], preferred_element_type=jnp.float32)
    o_ref[...] = y3.astype(o_ref.dtype)
    ps_ref[0, 0:1, :] = jnp.sum(y3, axis=0, keepdims=True)
    ps_ref[0, 1:2, :] = jnp.sum(y3 * y3, axis=0, keepdims=True)


def _bn_identconv_add_relu_kernel(y_ref, st_ref, g_ref, b_ref, xs_ref, wid_ref, bid_ref,
                                  o_ref, *, count):
    """Fused: BN3-normalize + identity 1x1 conv (with bias) + residual add + ReLU."""
    mean, rstd = _bn_params(st_ref, count)
    h = (y_ref[...].astype(jnp.float32) - mean) * rstd * g_ref[...] + b_ref[...]
    ident = jnp.dot(xs_ref[...], wid_ref[...], preferred_element_type=jnp.float32) + bid_ref[...]
    o_ref[...] = jnp.maximum(h + ident, 0.0)


def _bn_skip_add_relu_kernel(y_ref, st_ref, g_ref, b_ref, id_ref, o_ref, *, count):
    """Fused: BN3-normalize + straight skip add + ReLU."""
    mean, rstd = _bn_params(st_ref, count)
    h = (y_ref[...].astype(jnp.float32) - mean) * rstd * g_ref[...] + b_ref[...]
    o_ref[...] = jnp.maximum(h + id_ref[...].astype(jnp.float32), 0.0)


# ----------------------------- Pallas wrappers ----------------------------- #

def _conv1x1_stats(x2d, w, dt):
    M, Cin = x2d.shape
    Cout = w.shape[1]
    dtb = jnp.dtype(dt).itemsize
    tm = _pick_tile(M, 2 * (Cin * x2d.dtype.itemsize + Cout * dtb))
    nblk = M // tm
    y, ps = pl.pallas_call(
        _matmul_stats_kernel,
        out_shape=(jax.ShapeDtypeStruct((M, Cout), dt),
                   jax.ShapeDtypeStruct((nblk, 2, Cout), jnp.float32)),
        grid=(nblk,),
        in_specs=[pl.BlockSpec((tm, Cin), lambda i: (i, 0)),
                  pl.BlockSpec((Cin, Cout), lambda i: (0, 0))],
        out_specs=(pl.BlockSpec((tm, Cout), lambda i: (i, 0)),
                   pl.BlockSpec((1, 2, Cout), lambda i: (i, 0, 0))),
        compiler_params=_cparams(),
    )(x2d, w.astype(dt))
    return y, jnp.sum(ps, axis=0)


def _bn_relu_xla(y, stats, g, b, count):
    """BN normalize + ReLU as XLA elementwise; fuses into the following pad /
    phase-split / row-tile gather producer (no standalone mem-bound Pallas pass)."""
    inv_n = 1.0 / count
    mean = stats[0:1, :] * inv_n
    var = jnp.maximum(stats[1:2, :] * inv_n - mean * mean, 0.0)
    return jnp.maximum((y.astype(jnp.float32) - mean) * lax.rsqrt(var + EPS) * g + b, 0.0)


def _prep_conv2_input(h1, stride, cout, dt):
    """Zero-pad spatially by 1, split H/W into `stride` phases (so all in-kernel reads
    are contiguous), and gather overlapping output-row tiles with a (2//stride)-row
    halo so the 3x3 conv can be row-tiled with a plain BlockSpec grid. Tiny XLA glue
    pass replacing the 9x im2col materialization."""
    N, H, W, C = h1.shape
    Hout = (H + 2 - 3) // stride + 1
    Wout = (W + 2 - 3) // stride + 1
    q = 2 // stride
    Hq, Wq = Hout + q, Wout + q
    Hpad, Wpad = stride * Hq, stride * Wq
    xp = jnp.pad(h1, ((0, 0), (1, Hpad - H - 1), (1, Wpad - W - 1), (0, 0)))
    xph = xp.reshape(N, Hq, stride, Wq, stride, C).transpose(0, 2, 1, 4, 3, 5)
    dtb = jnp.dtype(dt).itemsize
    row_bytes = 2 * (stride * stride * Wq * C * dtb + Wout * cout * dtb)
    th = _pick_row_tile(Hout, row_bytes)
    nt = Hout // th
    rows = jnp.arange(nt)[:, None] * th + jnp.arange(th + q)[None, :]   # (nt, th+q)
    xt = xph[:, :, rows]                           # (N, stride, nt, th+q, stride, Wq, C)
    xt = xt.transpose(0, 2, 1, 3, 4, 5, 6)         # (N, nt, stride, th+q, stride, Wq, C)
    xt = xt.reshape(N * nt, stride, th + q, stride, Wq, C)
    return xt, Hout, Wout, th, nt


def _conv3x3_stats(h1_nhwc, w2, stride, dt):
    N, H, W, C = h1_nhwc.shape
    Cout = w2.shape[-1]
    xt, Hout, Wout, th, nt = _prep_conv2_input(h1_nhwc, stride, Cout, dt)
    _, s1, thq, s2, Wq, _ = xt.shape
    w2r = w2.reshape(9, C, Cout).astype(dt)
    y, ps = pl.pallas_call(
        functools.partial(_conv3x3_stats_kernel, stride=stride, th=th, Wout=Wout),
        out_shape=(jax.ShapeDtypeStruct((N * nt, th * Wout, Cout), dt),
                   jax.ShapeDtypeStruct((N * nt, 2, Cout), jnp.float32)),
        grid=(N * nt,),
        in_specs=[pl.BlockSpec((1, s1, thq, s2, Wq, C),
                               lambda i: (i, 0, 0, 0, 0, 0)),
                  pl.BlockSpec((9, C, Cout), lambda i: (0, 0, 0))],
        out_specs=(pl.BlockSpec((1, th * Wout, Cout), lambda i: (i, 0, 0)),
                   pl.BlockSpec((1, 2, Cout), lambda i: (i, 0, 0))),
        compiler_params=_cparams(),
    )(xt, w2r)
    return y.reshape(N * Hout * Wout, Cout), jnp.sum(ps, axis=0), Hout, Wout


def _bn_act_conv1x1_stats(y, stats, g, b, w, dt):
    M, Cin = y.shape
    Cout = w.shape[1]
    dtb = jnp.dtype(dt).itemsize
    tm = _pick_tile(M, 2 * (Cin * y.dtype.itemsize + Cout * dtb))
    nblk = M // tm
    y3, ps = pl.pallas_call(
        functools.partial(_bn_act_matmul_stats_kernel, count=float(M)),
        out_shape=(jax.ShapeDtypeStruct((M, Cout), dt),
                   jax.ShapeDtypeStruct((nblk, 2, Cout), jnp.float32)),
        grid=(nblk,),
        in_specs=[pl.BlockSpec((tm, Cin), lambda i: (i, 0)),
                  pl.BlockSpec((2, Cin), lambda i: (0, 0)),
                  pl.BlockSpec((1, Cin), lambda i: (0, 0)),
                  pl.BlockSpec((1, Cin), lambda i: (0, 0)),
                  pl.BlockSpec((Cin, Cout), lambda i: (0, 0))],
        out_specs=(pl.BlockSpec((tm, Cout), lambda i: (i, 0)),
                   pl.BlockSpec((1, 2, Cout), lambda i: (i, 0, 0))),
        compiler_params=_cparams(),
    )(y, stats, g, b, w.astype(dt))
    return y3, jnp.sum(ps, axis=0)


def _bn_identconv_add_relu(y, stats, g, b, xs2d, wid, bid):
    M, Cout = y.shape
    Cin = xs2d.shape[1]
    tm = _pick_tile(M, 2 * (Cout * y.dtype.itemsize + Cin * xs2d.dtype.itemsize + Cout * 4))
    return pl.pallas_call(
        functools.partial(_bn_identconv_add_relu_kernel, count=float(M)),
        out_shape=jax.ShapeDtypeStruct((M, Cout), jnp.float32),
        grid=(M // tm,),
        in_specs=[pl.BlockSpec((tm, Cout), lambda i: (i, 0)),
                  pl.BlockSpec((2, Cout), lambda i: (0, 0)),
                  pl.BlockSpec((1, Cout), lambda i: (0, 0)),
                  pl.BlockSpec((1, Cout), lambda i: (0, 0)),
                  pl.BlockSpec((tm, Cin), lambda i: (i, 0)),
                  pl.BlockSpec((Cin, Cout), lambda i: (0, 0)),
                  pl.BlockSpec((1, Cout), lambda i: (0, 0))],
        out_specs=pl.BlockSpec((tm, Cout), lambda i: (i, 0)),
        compiler_params=_cparams(),
    )(y, stats, g, b, xs2d, wid.astype(xs2d.dtype), bid)


def _bn_skip_add_relu(y, stats, g, b, ident2d):
    M, Cout = y.shape
    tm = _pick_tile(M, 2 * (Cout * y.dtype.itemsize + Cout * ident2d.dtype.itemsize + Cout * 4))
    return pl.pallas_call(
        functools.partial(_bn_skip_add_relu_kernel, count=float(M)),
        out_shape=jax.ShapeDtypeStruct((M, Cout), jnp.float32),
        grid=(M // tm,),
        in_specs=[pl.BlockSpec((tm, Cout), lambda i: (i, 0)),
                  pl.BlockSpec((2, Cout), lambda i: (0, 0)),
                  pl.BlockSpec((1, Cout), lambda i: (0, 0)),
                  pl.BlockSpec((1, Cout), lambda i: (0, 0)),
                  pl.BlockSpec((tm, Cout), lambda i: (i, 0))],
        out_specs=pl.BlockSpec((tm, Cout), lambda i: (i, 0)),
        compiler_params=_cparams(),
    )(y, stats, g, b, ident2d)


# ------------------------------- block forward ------------------------------ #

def block_forward(x_nchw, p, stride=1, identity_conv=True, matmul_dtype=MATMUL_DTYPE):
    """Pallas implementation of block.forward. x_nchw: (N, Cin, H, W) float32."""
    N, Cin, H, W = x_nchw.shape
    Cm = p["w1"].shape[1]
    Cout = 4 * Cm
    dt = matmul_dtype
    # TODO(synk): keep activations NHWC end-to-end in the caller to drop these transposes.
    x = jnp.transpose(x_nchw, (0, 2, 3, 1))
    x2d = x.reshape(N * H * W, Cin)

    # stage 1: conv1 (1x1) + BN1 partial stats (conv biases before BN are dropped:
    # exactly cancelled by the mean subtraction)
    y1, st1 = _conv1x1_stats(x2d, p["w1"], dt)

    # BN1 normalize + ReLU: XLA elementwise fused into the pad/phase-split/row-tile gather
    h1 = _bn_relu_xla(y1, st1, p["g1"], p["be1"], float(N * H * W)).astype(dt)

    # stage 2: conv2 (3x3, stride, pad=1): row-tiled, 9 vreg-accumulated MXU matmuls + BN2 stats
    y2, st2, Hout, Wout = _conv3x3_stats(h1.reshape(N, H, W, Cm), p["w2"], stride, dt)

    # stage 3 (fused): BN2 normalize + ReLU + conv3 (1x1, 4x) + BN3 stats
    y3, st3 = _bn_act_conv1x1_stats(y2, st2, p["g2"], p["be2"], p["w3"], dt)

    # final (fused): BN3 normalize + identity path + residual add + ReLU
    if identity_conv:
        xs2d = x[:, ::stride, ::stride, :].reshape(N * Hout * Wout, Cin).astype(dt)
        out2d = _bn_identconv_add_relu(y3, st3, p["g3"], p["be3"], xs2d, p["wid"], p["bid"])
    else:
        assert stride == 1 and Cin == Cout, \
            "skip path (identity_conv=None) requires stride==1 and Cin == 4*Cm"
        out2d = _bn_skip_add_relu(y3, st3, p["g3"], p["be3"], x2d)

    out = out2d.reshape(N, Hout, Wout, Cout)
    return jnp.transpose(out, (0, 3, 1, 2))


# ------------------------- parameters (deterministic) ----------------------- #

def make_params(key, cin, cmid, identity_conv):
    ks = jax.random.split(key, 16)
    f32 = jnp.float32

    def n(k, shape, scale=0.1):
        return scale * jax.random.normal(k, shape, f32)

    p = {
        "w1": n(ks[0], (cin, cmid)),
        "b1": n(ks[1], (1, cmid)),          # kept for the reference; cancelled by BN
        "g1": 1.0 + n(ks[2], (1, cmid)),
        "be1": n(ks[3], (1, cmid)),
        "w2": n(ks[4], (3, 3, cmid, cmid)),  # HWIO
        "b2": n(ks[5], (1, cmid)),
        "g2": 1.0 + n(ks[6], (1, cmid)),
        "be2": n(ks[7], (1, cmid)),
        "w3": n(ks[8], (cmid, 4 * cmid)),
        "b3": n(ks[9], (1, 4 * cmid)),
        "g3": 1.0 + n(ks[10], (1, 4 * cmid)),
        "be3": n(ks[11], (1, 4 * cmid)),
    }
    if identity_conv:
        p["wid"] = n(ks[12], (cin, 4 * cmid))
        p["bid"] = n(ks[13], (1, 4 * cmid))
    return p


# ------------------------------ pure-JAX reference --------------------------- #

def _ref_conv2d(x, w_hwio, b, stride, padding):
    y = lax.conv_general_dilated(
        x, w_hwio, (stride, stride), padding,
        dimension_numbers=("NCHW", "HWIO", "NCHW"))
    return y + b.reshape(1, -1, 1, 1)


def _ref_bn(x, g, b):
    mean = jnp.mean(x, axis=(0, 2, 3), keepdims=True)
    var = jnp.mean(jnp.square(x - mean), axis=(0, 2, 3), keepdims=True)
    return (x - mean) * lax.rsqrt(var + EPS) * g.reshape(1, -1, 1, 1) + b.reshape(1, -1, 1, 1)


def ref_block(x, p, stride, identity_conv):
    cin = x.shape[1]
    cm = p["w1"].shape[1]
    h = _ref_conv2d(x, p["w1"].reshape(1, 1, cin, cm), p["b1"].ravel(), 1, ((0, 0), (0, 0)))
    h = jnp.maximum(_ref_bn(h, p["g1"].ravel(), p["be1"].ravel()), 0.0)
    h = _ref_conv2d(h, p["w2"], p["b2"].ravel(), stride, ((1, 1), (1, 1)))
    h = jnp.maximum(_ref_bn(h, p["g2"].ravel(), p["be2"].ravel()), 0.0)
    h = _ref_conv2d(h, p["w3"].reshape(1, 1, cm, 4 * cm), p["b3"].ravel(), 1, ((0, 0), (0, 0)))
    h = _ref_bn(h, p["g3"].ravel(), p["be3"].ravel())
    if identity_conv:
        ident = _ref_conv2d(x, p["wid"].reshape(1, 1, cin, 4 * cm), p["bid"].ravel(),
                            stride, ((0, 0), (0, 0)))
    else:
        ident = x
    return jnp.maximum(h + ident, 0.0)


# ----------------------------------- main ----------------------------------- #

if __name__ == "__main__":
    key = jax.random.PRNGKey(0)
    kx1, kx2, kp1, kp2 = jax.random.split(key, 4)

    # Case A: downsampling bottleneck (pattern 3): Cin=8 -> mid=4 -> out=16, stride=2
    N, Cin, H, W, Cm = 2, 8, 16, 16, 4
    x = jax.random.normal(kx1, (N, Cin, H, W), jnp.float32)
    params = make_params(kp1, Cin, Cm, identity_conv=True)
    ref = ref_block(x, params, stride=2, identity_conv=True)

    # exact-semantics check (f32 matmul path)
    out_f32 = jax.block_until_ready(
        block_forward(x, params, stride=2, identity_conv=True, matmul_dtype=jnp.float32))
    assert out_f32.shape == (N, 4 * Cm, H // 2, W // 2)
    assert jnp.allclose(out_f32, ref, atol=2e-3, rtol=2e-3)

    # performance-mode check (bf16 matmul inputs, f32 accumulation / BN math)
    out_bf16 = jax.block_until_ready(block_forward(x, params, stride=2, identity_conv=True))
    rel = jnp.linalg.norm(out_bf16 - ref) / jnp.linalg.norm(ref)
    assert out_bf16.shape == ref.shape
    assert float(rel) < 5e-2

    # Case B: identity-preserving bottleneck (pattern 1): Cin=16 = 4*mid, stride=1
    Cin_b, Cm_b = 16, 4
    x_b = jax.random.normal(kx2, (N, Cin_b, H, W), jnp.float32)
    params_b = make_params(kp2, Cin_b, Cm_b, identity_conv=False)
    ref_b = ref_block(x_b, params_b, stride=1, identity_conv=False)
    out_b = jax.block_until_ready(
        block_forward(x_b, params_b, stride=1, identity_conv=False, matmul_dtype=jnp.float32))
    assert out_b.shape == (N, Cin_b, H, W)
    assert jnp.allclose(out_b, ref_b, atol=2e-3, rtol=2e-3)

    print("KERNEL_OK")
</pallas_src>

<mosaic_0001>
module attributes {stable_mosaic.version = 11 : i64} {
  func.func @_matmul_stats_kernel(%arg0: i32, %arg1: memref<512x8xf32, #tpu.memory_space<vmem>>, %arg2: memref<8x4xf32, #tpu.memory_space<vmem>>, %arg3: memref<512x4xf32, #tpu.memory_space<vmem>>, %arg4: memref<1x2x4xf32, #tpu.memory_space<vmem>>) attributes {dimension_semantics = [#tpu.dimension_semantics<parallel>], iteration_bounds = array<i64: 1>, scalar_prefetch = 0 : i64, scratch_operands = 0 : i64, tpu.core_type = #tpu.core_type<tc>, window_params = [{transform_indices = @transform_0, window_bounds = array<i64: 512, 8>}, {pipeline_mode = #tpu.pipeline_mode<synchronous>, transform_indices = @transform_1, window_bounds = array<i64: 8, 4>}, {transform_indices = @transform_2, window_bounds = array<i64: 512, 4>}, {transform_indices = @transform_3, window_bounds = array<i64: 1, 2, 4>}]} {
    %c0 = arith.constant 0 : index
    %c0_0 = arith.constant 0 : index
    %0 = vector.load %arg1[%c0, %c0_0] : memref<512x8xf32, #tpu.memory_space<vmem>>, vector<512x8xf32>
    %c0_1 = arith.constant 0 : index
    %c0_2 = arith.constant 0 : index
    %1 = vector.load %arg2[%c0_1, %c0_2] : memref<8x4xf32, #tpu.memory_space<vmem>>, vector<8x4xf32>
    %cst = arith.constant dense<0.000000e+00> : vector<512x4xf32>
    %2 = tpu.matmul %0, %1, %cst {dimension_numbers = #tpu.dot_dimension_numbers<[1], [0], [0], [1], [0, 0, 1, 1], [], []>} : vector<512x8xf32>, vector<8x4xf32>, vector<512x4xf32> -> vector<512x4xf32>
    %c0_3 = arith.constant 0 : index
    %c0_4 = arith.constant 0 : index
    %3 = vector.load %arg3[%c0_3, %c0_4] : memref<512x4xf32, #tpu.memory_space<vmem>>, vector<512x4xf32>
    tpu.vector_store %arg3[%c0_3, %c0_4], %2 {strides = array<i32>} : memref<512x4xf32, #tpu.memory_space<vmem>>, vector<512x4xf32>,
    %cst_5 = arith.constant dense<0.000000e+00> : vector<4xf32>
    %4 = vector.multi_reduction <add>, %2, %cst_5 [0] : vector<512x4xf32> to vector<4xf32>
    %5 = vector.shape_cast %4 : vector<4xf32> to vector<1x4xf32>
    %c0_6 = arith.constant 0 : index
    %c0_7 = arith.constant 0 : index
    %c0_8 = arith.constant 0 : index
    %6 = vector.load %arg4[%c0_6, %c0_7, %c0_8] : memref<1x2x4xf32, #tpu.memory_space<vmem>>, vector<1x1x4xf32>
    %7 = vector.shape_cast %6 : vector<1x1x4xf32> to vector<1x4xf32>
    %8 = vector.shape_cast %5 : vector<1x4xf32> to vector<1x1x4xf32>
    tpu.vector_store %arg4[%c0_6, %c0_7, %c0_8], %8 {strides = array<i32>} : memref<1x2x4xf32, #tpu.memory_space<vmem>>, vector<1x1x4xf32>,
    %9 = arith.mulf %2, %2 : vector<512x4xf32>
    %cst_9 = arith.constant dense<0.000000e+00> : vector<4xf32>
    %10 = vector.multi_reduction <add>, %9, %cst_9 [0] : vector<512x4xf32> to vector<4xf32>
    %11 = vector.shape_cast %10 : vector<4xf32> to vector<1x4xf32>
    %c0_10 = arith.constant 0 : index
    %c1 = arith.constant 1 : index
    %c0_11 = arith.constant 0 : index
    %12 = vector.load %arg4[%c0_10, %c1, %c0_11] : memref<1x2x4xf32, #tpu.memory_space<vmem>>, vector<1x1x4xf32>
    %13 = vector.shape_cast %12 : vector<1x1x4xf32> to vector<1x4xf32>
    %14 = vector.shape_cast %11 : vector<1x4xf32> to vector<1x1x4xf32>
    tpu.vector_store %arg4[%c0_10, %c1, %c0_11], %14 {strides = array<i32>} : memref<1x2x4xf32, #tpu.memory_space<vmem>>, vector<1x1x4xf32>,
    return
  }
  func.func @transform_0(%arg0: i32) -> (i32, i32) {
    %c0_i32 = arith.constant 0 : i32
    %c0_i32_0 = arith.constant 0 : i32
    return %arg0, %c0_i32 : i32, i32
  }
  func.func @transform_1(%arg0: i32) -> (i32, i32) {
    %c0_i32 = arith.constant 0 : i32
    %c0_i32_0 = arith.constant 0 : i32
    %c0_i32_1 = arith.constant 0 : i32
    return %c0_i32, %c0_i32_0 : i32, i32
  }
  func.func @transform_2(%arg0: i32) -> (i32, i32) {
    %c0_i32 = arith.constant 0 : i32
    %c0_i32_0 = arith.constant 0 : i32
    return %arg0, %c0_i32 : i32, i32
  }
  func.func @transform_3(%arg0: i32) -> (i32, i32, i32) {
    %c0_i32 = arith.constant 0 : i32
    %c0_i32_0 = arith.constant 0 : i32
    %c0_i32_1 = arith.constant 0 : i32
    return %arg0, %c0_i32, %c0_i32_0 : i32, i32, i32
  }
}

</mosaic_0001>

<llo_original>
// kernel: tpu_custom_call.1
$region0: #{tpu_custom_call.1}
  #allocation0 [shape = 'u32[]', space=smem, size = 0x4, offset = 0x4, fixed_abs, tag = 'smem constant byte address 0x4 - core index']
  #allocation1 [shape = 'u32[144,128]{1,0:T(1,128)}', space=vmem, size = 0x12000, scoped, tag = 'internal scratch']
  %s0 = inlined_call_operand.vmem [shape: f32[512,8], index: 0, kind: input, shape index: {}]
  %s1 = inlined_call_operand.vmem [shape: f32[8,4], index: 1, kind: input, shape index: {}]
  %s2 = inlined_call_operand.vmem [shape: f32[512,4], index: 2, kind: output, shape index: {0}]
  %s3 = inlined_call_operand.hbm [shape: f32[1,2,4], index: 3, kind: output, shape index: {1}]
  %4 = xla_tuple %s2, %s3
  %s5 = sld [smem:[#allocation0]]
  $region26: #{tpu_custom_call.1} parent=0
    _
  %s7 = ssub.s32 1, %s5
  %s8 = scalar_select 0, %s7, %s5
  $region1: #{tpu_custom_call.1} parent=0
    #allocation2 [shape = 'u8[1024]{0}', space=vmem, size = 0x400, scoped, tag = 'output window, operand 1, single buffered']
    #allocation3 [shape = 's32[1]{0}', space=sflag, size = 0x4, scoped, tag = 'scoped memory for tpu_custom_call.1']
    %9 = vsyncpa [#allocation3], 0
    // Predicated region
    $region2: #{tpu_custom_call.1} parent=1 // pred_check
      _
    $region3: #{tpu_custom_call.1} parent=1 // pred_check_branch
      %11 = sbr.rel (0) target = $region5
    $region4: #{tpu_custom_call.1} parent=1 // pred_region
      _
    $region5: #{tpu_custom_call.1} parent=1 // pred_fallthru
      _
    // Predicated region
    $region6: #{tpu_custom_call.1} parent=1 // pred_check
      _
    $region7: #{tpu_custom_call.1} parent=1 // pred_check_branch
      %13 = sbr.rel (0) target = $region9
    $region8: #{tpu_custom_call.1} parent=1 // pred_region
      _
    $region9: #{tpu_custom_call.1} parent=1 // pred_fallthru
      _
    %v14 = vld [vmem:[%s0] sm:$0xff]
    %v15 = vld [vmem:[%s0 + $0x8] sm:$0xff]
    %v16 = vld [vmem:[%s0 + $0x10] sm:$0xff]
    %v17 = vld [vmem:[%s0 + $0x18] sm:$0xff]
    %v18 = vld [vmem:[%s0 + $0x20] sm:$0xff]
    %v19 = vld [vmem:[%s0 + $0x28] sm:$0xff]
    %v20 = vld [vmem:[%s0 + $0x30] sm:$0xff]
    %v21 = vld [vmem:[%s0 + $0x38] sm:$0xff]
    %v22 = vld [vmem:[%s0 + $0x40] sm:$0xff]
    %v23 = vld [vmem:[%s0 + $0x48] sm:$0xff]
    %v24 = vld [vmem:[%s0 + $0x50] sm:$0xff]
    %v25 = vld [vmem:[%s0 + $0x58] sm:$0xff]
    %v26 = vld [vmem:[%s0 + $0x60] sm:$0xff]
    %v27 = vld [vmem:[%s0 + $0x68] sm:$0xff]
    %v28 = vld [vmem:[%s0 + $0x70] sm:$0xff]
    %v29 = vld [vmem:[%s0 + $0x78] sm:$0xff]
    %v30 = vld [vmem:[%s0 + $0x80] sm:$0xff]
    %v31 = vld [vmem:[%s0 + $0x88] sm:$0xff]
    %v32 = vld [vmem:[%s0 + $0x90] sm:$0xff]
    %v33 = vld [vmem:[%s0 + $0x98] sm:$0xff]
    %v34 = vld [vmem:[%s0 + $0xa0] sm:$0xff]
    %v35 = vld [vmem:[%s0 + $0xa8] sm:$0xff]
    %v36 = vld [vmem:[%s0 + $0xb0] sm:$0xff]
    %v37 = vld [vmem:[%s0 + $0xb8] sm:$0xff]
    %v38 = vld [vmem:[%s0 + $0xc0] sm:$0xff]
    %v39 = vld [vmem:[%s0 + $0xc8] sm:$0xff]
    %v40 = vld [vmem:[%s0 + $0xd0] sm:$0xff]
    %v41 = vld [vmem:[%s0 + $0xd8] sm:$0xff]
    %v42 = vld [vmem:[%s0 + $0xe0] sm:$0xff]
    %v43 = vld [vmem:[%s0 + $0xe8] sm:$0xff]
    %v44 = vld [vmem:[%s0 + $0xf0] sm:$0xff]
    %v45 = vld [vmem:[%s0 + $0xf8] sm:$0xff]
    %v46 = vld [vmem:[%s0 + $0x100] sm:$0xff]
    %v47 = vld [vmem:[%s0 + $0x108] sm:$0xff]
    %v48 = vld [vmem:[%s0 + $0x110] sm:$0xff]
    %v49 = vld [vmem:[%s0 + $0x118] sm:$0xff]
    %v50 = vld [vmem:[%s0 + $0x120] sm:$0xff]
    %v51 = vld [vmem:[%s0 + $0x128] sm:$0xff]
    %v52 = vld [vmem:[%s0 + $0x130] sm:$0xff]
    %v53 = vld [vmem:[%s0 + $0x138] sm:$0xff]
    %v54 = vld [vmem:[%s0 + $0x140] sm:$0xff]
    %v55 = vld [vmem:[%s0 + $0x148] sm:$0xff]
    %v56 = vld [vmem:[%s0 + $0x150] sm:$0xff]
    %v57 = vld [vmem:[%s0 + $0x158] sm:$0xff]
    %v58 = vld [vmem:[%s0 + $0x160] sm:$0xff]
    %v59 = vld [vmem:[%s0 + $0x168] sm:$0xff]
    %v60 = vld [vmem:[%s0 + $0x170] sm:$0xff]
    %v61 = vld [vmem:[%s0 + $0x178] sm:$0xff]
    %v62 = vld [vmem:[%s0 + $0x180] sm:$0xff]
    %v63 = vld [vmem:[%s0 + $0x188] sm:$0xff]
    %v64 = vld [vmem:[%s0 + $0x190] sm:$0xff]
    %v65 = vld [vmem:[%s0 + $0x198] sm:$0xff]
    %v66 = vld [vmem:[%s0 + $0x1a0] sm:$0xff]
    %v67 = vld [vmem:[%s0 + $0x1a8] sm:$0xff]
    %v68 = vld [vmem:[%s0 + $0x1b0] sm:$0xff]
    %v69 = vld [vmem:[%s0 + $0x1b8] sm:$0xff]
    %v70 = vld [vmem:[%s0 + $0x1c0] sm:$0xff]
    %v71 = vld [vmem:[%s0 + $0x1c8] sm:$0xff]
    %v72 = vld [vmem:[%s0 + $0x1d0] sm:$0xff]
    %v73 = vld [vmem:[%s0 + $0x1d8] sm:$0xff]
    %v74 = vld [vmem:[%s0 + $0x1e0] sm:$0xff]
    %v75 = vld [vmem:[%s0 + $0x1e8] sm:$0xff]
    %v76 = vld [vmem:[%s0 + $0x1f0] sm:$0xff]
    %v77 = vld [vmem:[%s0 + $0x1f8] sm:$0xff]
    %v78 = vld [vmem:[%s1] sm:$0xff]
    %vm79 = vcmask 64512
    %v81 = vsel %vm79, %v14, 0
    %v84 = vsel %vm79, %v15, 0
    %v87 = vsel %vm79, %v16, 0
    %v90 = vsel %vm79, %v17, 0
    %v93 = vsel %vm79, %v18, 0
    %v96 = vsel %vm79, %v19, 0
    %v99 = vsel %vm79, %v20, 0
    %v102 = vsel %vm79, %v21, 0
    %v105 = vsel %vm79, %v22, 0
    %v108 = vsel %vm79, %v23, 0
    %v111 = vsel %vm79, %v24, 0
    %v114 = vsel %vm79, %v25, 0
    %v117 = vsel %vm79, %v26, 0
    %v120 = vsel %vm79, %v27, 0
    %v123 = vsel %vm79, %v28, 0
    %v126 = vsel %vm79, %v29, 0
    %v129 = vsel %vm79, %v30, 0
    %v132 = vsel %vm79, %v31, 0
    %v135 = vsel %vm79, %v32, 0
    %v138 = vsel %vm79, %v33, 0
    %v141 = vsel %vm79, %v34, 0
    %v144 = vsel %vm79, %v35, 0
    %v147 = vsel %vm79, %v36, 0
    %v150 = vsel %vm79, %v37, 0
    %v153 = vsel %vm79, %v38, 0
    %v156 = vsel %vm79, %v39, 0
    %v159 = vsel %vm79, %v40, 0
    %v162 = vsel %vm79, %v41, 0
    %v165 = vsel %vm79, %v42, 0
    %v168 = vsel %vm79, %v43, 0
    %v171 = vsel %vm79, %v44, 0
    %v174 = vsel %vm79, %v45, 0
    %v177 = vsel %vm79, %v46, 0
    %v180 = vsel %vm79, %v47, 0
    %v183 = vsel %vm79, %v48, 0
    %v186 = vsel %vm79, %v49, 0
    %v189 = vsel %vm79, %v50, 0
    %v192 = vsel %vm79, %v51, 0
    %v195 = vsel %vm79, %v52, 0
    %v198 = vsel %vm79, %v53, 0
    %v201 = vsel %vm79, %v54, 0
    %v204 = vsel %vm79, %v55, 0
    %v207 = vsel %vm79, %v56, 0
    %v210 = vsel %vm79, %v57, 0
    %v213 = vsel %vm79, %v58, 0
    %v216 = vsel %vm79, %v59, 0
    %v219 = vsel %vm79, %v60, 0
    %v222 = vsel %vm79, %v61, 0
    %v225 = vsel %vm79, %v62, 0
    %v228 = vsel %vm79, %v63, 0
    %v231 = vsel %vm79, %v64, 0
    %v234 = vsel %vm79, %v65, 0
    %v237 = vsel %vm79, %v66, 0
    %v240 = vsel %vm79, %v67, 0
    %v243 = vsel %vm79, %v68, 0
    %v246 = vsel %vm79, %v69, 0
    %v249 = vsel %vm79, %v70, 0
    %v252 = vsel %vm79, %v71, 0
    %v255 = vsel %vm79, %v72, 0
    %v258 = vsel %vm79, %v73, 0
    %v261 = vsel %vm79, %v74, 0
    %v264 = vsel %vm79, %v75, 0
    %v267 = vsel %vm79, %v76, 0
    %v270 = vsel %vm79, %v77, 0
    %272 = vmatprep.subr.mxu0 0.0
    %273 = vmatpush1.msra.mxu0 %v78
    %274 = vmatprep.subr.mxu0 0.0
    %275 = vmatpush1.msra.mxu0 0.0
    %276 = vmatprep.subr.mxu0 0.0
    %277 = vmatpush1.msra.mxu0 0.0
    %278 = vmatprep.subr.mxu0 0.0
    %279 = vmatpush1.msra.mxu0 0.0
    %280 = vmatprep.subr.mxu0 0.0
    %281 = vmatpush1.msra.mxu0 0.0
    %282 = vmatprep.subr.mxu0 0.0
    %283 = vmatpush1.msra.mxu0 0.0
    %284 = vmatprep.subr.mxu0 0.0
    %285 = vmatpush1.msra.mxu0 0.0
    %286 = vmatprep.subr.mxu0 0.0
    %287 = vmatpush1.msra.mxu0 0.0
    %288 = vmatprep.subr.mxu0 0.0
    %289 = vmatpush1.msra.mxu0 0.0
    %290 = vmatprep.subr.mxu0 0.0
    %291 = vmatpush1.msra.mxu0 0.0
    %292 = vmatprep.subr.mxu0 0.0
    %293 = vmatpush1.msra.mxu0 0.0
    %294 = vmatprep.subr.mxu0 0.0
    %295 = vmatpush1.msra.mxu0 0.0
    %296 = vmatprep.subr.mxu0 0.0
    %297 = vmatpush1.msra.mxu0 0.0
    %298 = vmatprep.subr.mxu0 0.0
    %299 = vmatpush1.msra.mxu0 0.0
    %300 = vmatprep.subr.mxu0 0.0
    %301 = vmatpush1.msra.mxu0 0.0
    %302 = vmatprep.subr.mxu0 0.0
    %303 = vmatpush1.msra.mxu0 0.0
    %304 = vmatprep.subr.mxu0 0.0
    %305 = vmatpush1.msra.mxu0 0.0
    %306 = vmatprep.subr.mxu0 0.0
    %307 = vmatpush1.msra.mxu0 0.0
    %308 = vmatprep.subr.mxu0 0.0
    %309 = vmatpush1.msra.mxu0 0.0
    %310 = vmatprep.subr.mxu0 0.0
    %311 = vmatpush1.msra.mxu0 0.0
    %312 = vmatprep.subr.mxu0 0.0
    %313 = vmatpush1.msra.mxu0 0.0
    %314 = vmatprep.subr.mxu0 0.0
    %315 = vmatpush1.msra.mxu0 0.0
    %316 = vmatprep.subr.mxu0 0.0
    %317 = vmatpush1.msra.mxu0 0.0
    %318 = vmatprep.subr.mxu0 0.0
    %319 = vmatpush1.msra.mxu0 0.0
    %320 = vmatprep.subr.mxu0 0.0
    %321 = vmatpush1.msra.mxu0 0.0
    %322 = vmatprep.subr.mxu0 0.0
    %323 = vmatpush1.msra.mxu0 0.0
    %324 = vmatprep.subr.mxu0 0.0
    %325 = vmatpush1.msra.mxu0 0.0
    %326 = vmatprep.subr.mxu0 0.0
    %327 = vmatpush1.msra.mxu0 0.0
    %328 = vmatprep.subr.mxu0 0.0
    %329 = vmatpush1.msra.mxu0 0.0
    %330 = vmatprep.subr.mxu0 0.0
    %331 = vmatpush1.msra.mxu0 0.0
    %332 = vmatprep.subr.mxu0 0.0
    %333 = vmatpush1.msra.mxu0 0.0
    %334 = vmatprep.subr.mxu0 0.0
    %335 = vmatpush1.msra.mxu0 0.0
    %336 = vmatprep.mubr.f32.mxu0 0.0
    %337 = vmatmul.mubr.f32.gmra.mrb[0].mxu0 %v81
    %v338 = vpop.f32.mrb[0].mxu0
    %v339 = vadd.f32 0.0, %v338
    %v340 = vpop.f32.mrb[0].mxu0
    %341 = vmatprep.mubr.f32.mxu0 0.0
    %342 = vmatmul.mubr.f32.gmra.mrb[0].mxu0 %v84
    %v343 = vpop.f32.mrb[0].mxu0
    %v344 = vadd.f32 0.0, %v343
    %v345 = vpop.f32.mrb[0].mxu0
    %346 = vmatprep.mubr.f32.mxu0 0.0
    %347 = vmatmul.mubr.f32.gmra.mrb[0].mxu0 %v87
    %v348 = vpop.f32.mrb[0].mxu0
    %v349 = vadd.f32 0.0, %v348
    %v350 = vpop.f32.mrb[0].mxu0
    %351 = vmatprep.mubr.f32.mxu0 0.0
    %352 = vmatmul.mubr.f32.gmra.mrb[0].mxu0 %v90
    %v353 = vpop.f32.mrb[0].mxu0
    %v354 = vadd.f32 0.0, %v353
    %v355 = vpop.f32.mrb[0].mxu0
    %356 = vmatprep.mubr.f32.mxu0 0.0
    %357 = vmatmul.mubr.f32.gmra.mrb[0].mxu0 %v93
    %v358 = vpop.f32.mrb[0].mxu0
    %v359 = vadd.f32 0.0, %v358
    %v360 = vpop.f32.mrb[0].mxu0
    %361 = vmatprep.mubr.f32.mxu0 0.0
    %362 = vmatmul.mubr.f32.gmra.mrb[0].mxu0 %v96
    %v363 = vpop.f32.mrb[0].mxu0
    %v364 = vadd.f32 0.0, %v363
    %v365 = vpop.f32.mrb[0].mxu0
    %366 = vmatprep.mubr.f32.mxu0 0.0
    %367 = vmatmul.mubr.f32.gmra.mrb[0].mxu0 %v99
    %v368 = vpop.f32.mrb[0].mxu0
    %v369 = vadd.f32 0.0, %v368
    %v370 = vpop.f32.mrb[0].mxu0
    %371 = vmatprep.mubr.f32.mxu0 0.0
    %372 = vmatmul.mubr.f32.gmra.mrb[0].mxu0 %v102
    %v373 = vpop.f32.mrb[0].mxu0
    %v374 = vadd.f32 0.0, %v373
    %v375 = vpop.f32.mrb[0].mxu0
    %376 = vmatprep.mubr.f32.mxu0 0.0
    %377 = vmatmul.mubr.f32.gmra.mrb[0].mxu0 %v105
    %v378 = vpop.f32.mrb[0].mxu0
    %v379 = vadd.f32 0.0, %v378
    %v380 = vpop.f32.mrb[0].mxu0
    %381 = vmatprep.mubr.f32.mxu0 0.0
    %382 = vmatmul.mubr.f32.gmra.mrb[0].mxu0 %v108
    %v383 = vpop.f32.mrb[0].mxu0
    %v384 = vadd.f32 0.0, %v383
    %v385 = vpop.f32.mrb[0].mxu0
    %386 = vmatprep.mubr.f32.mxu0 0.0
    %387 = vmatmul.mubr.f32.gmra.mrb[0].mxu0 %v111
    %v388 = vpop.f32.mrb[0].mxu0
    %v389 = vadd.f32 0.0, %v388
    %v390 = vpop.f32.mrb[0].mxu0
    %391 = vmatprep.mubr.f32.mxu0 0.0
    %392 = vmatmul.mubr.f32.gmra.mrb[0].mxu0 %v114
    %v393 = vpop.f32.mrb[0].mxu0
    %v394 = vadd.f32 0.0, %v393
    %v395 = vpop.f32.mrb[0].mxu0
    %396 = vmatprep.mubr.f32.mxu0 0.0
    %397 = vmatmul.mubr.f32.gmra.mrb[0].mxu0 %v117
    %v398 = vpop.f32.mrb[0].mxu0
    %v399 = vadd.f32 0.0, %v398
    %v400 = vpop.f32.mrb[0].mxu0
    %401 = vmatprep.mubr.f32.mxu0 0.0
    %402 = vmatmul.mubr.f32.gmra.mrb[0].mxu0 %v120
    %v403 = vpop.f32.mrb[0].mxu0
    %v404 = vadd.f32 0.0, %v403
    %v405 = vpop.f32.mrb[0].mxu0
    %406 = vmatprep.mubr.f32.mxu0 0.0
    %407 = vmatmul.mubr.f32.gmra.mrb[0].mxu0 %v123
    %v408 = vpop.f32.mrb[0].mxu0
    %v409 = vadd.f32 0.0, %v408
    %v410 = vpop.f32.mrb[0].mxu0
    %411 = vmatprep.mubr.f32.mxu0 0.0
    %412 = vmatmul.mubr.f32.gmra.mrb[0].mxu0 %v126
    %v413 = vpop.f32.mrb[0].mxu0
    %v414 = vadd.f32 0.0, %v413
    %v415 = vpop.f32.mrb[0].mxu0
    %416 = vmatprep.mubr.f32.mxu0 0.0
    %417 = vmatmul.mubr.f32.gmra.mrb[0].mxu0 %v129
    %v418 = vpop.f32.mrb[0].mxu0
    %v419 = vadd.f32 0.0, %v418
    %v420 = vpop.f32.mrb[0].mxu0
    %421 = vmatprep.mubr.f32.mxu0 0.0
    %422 = vmatmul.mubr.f32.gmra.mrb[0].mxu0 %v132
    %v423 = vpop.f32.mrb[0].mxu0
    %v424 = vadd.f32 0.0, %v423
    %v425 = vpop.f32.mrb[0].mxu0
    %426 = vmatprep.mubr.f32.mxu0 0.0
    %427 = vmatmul.mubr.f32.gmra.mrb[0].mxu0 %v135
    %v428 = vpop.f32.mrb[0].mxu0
    %v429 = vadd.f32 0.0, %v428
    %v430 = vpop.f32.mrb[0].mxu0
    %431 = vmatprep.mubr.f32.mxu0 0.0
    %432 = vmatmul.mubr.f32.gmra.mrb[0].mxu0 %v138
    %v433 = vpop.f32.mrb[0].mxu0
    %v434 = vadd.f32 0.0, %v433
    %v435 = vpop.f32.mrb[0].mxu0
    %436 = vmatprep.mubr.f32.mxu0 0.0
    %437 = vmatmul.mubr.f32.gmra.mrb[0].mxu0 %v141
    %v438 = vpop.f32.mrb[0].mxu0
    %v439 = vadd.f32 0.0, %v438
    %v440 = vpop.f32.mrb[0].mxu0
    %441 = vmatprep.mubr.f32.mxu0 0.0
    %442 = vmatmul.mubr.f32.gmra.mrb[0].mxu0 %v144
    %v443 = vpop.f32.mrb[0].mxu0
    %v444 = vadd.f32 0.0, %v443
    %v445 = vpop.f32.mrb[0].mxu0
    %446 = vmatprep.mubr.f32.mxu0 0.0
    %447 = vmatmul.mubr.f32.gmra.mrb[0].mxu0 %v147
    %v448 = vpop.f32.mrb[0].mxu0
    %v449 = vadd.f32 0.0, %v448
    %v450 = vpop.f32.mrb[0].mxu0
    %451 = vmatprep.mubr.f32.mxu0 0.0
    %452 = vmatmul.mubr.f32.gmra.mrb[0].mxu0 %v150
    %v453 = vpop.f32.mrb[0].mxu0
    %v454 = vadd.f32 0.0, %v453
    %v455 = vpop.f32.mrb[0].mxu0
    %456 = vmatprep.mubr.f32.mxu0 0.0
    %457 = vmatmul.mubr.f32.gmra.mrb[0].mxu0 %v153
    %v458 = vpop.f32.mrb[0].mxu0
    %v459 = vadd.f32 0.0, %v458
    %v460 = vpop.f32.mrb[0].mxu0
    %461 = vmatprep.mubr.f32.mxu0 0.0
    %462 = vmatmul.mubr.f32.gmra.mrb[0].mxu0 %v156
    %v463 = vpop.f32.mrb[0].mxu0
    %v464 = vadd.f32 0.0, %v463
    %v465 = vpop.f32.mrb[0].mxu0
    %466 = vmatprep.mubr.f32.mxu0 0.0
    %467 = vmatmul.mubr.f32.gmra.mrb[0].mxu0 %v159
    %v468 = vpop.f32.mrb[0].mxu0
    %v469 = vadd.f32 0.0, %v468
    %v470 = vpop.f32.mrb[0].mxu0
    %471 = vmatprep.mubr.f32.mxu0 0.0
    %472 = vmatmul.mubr.f32.gmra.mrb[0].mxu0 %v162
    %v473 = vpop.f32.mrb[0].mxu0
    %v474 = vadd.f32 0.0, %v473
    %v475 = vpop.f32.mrb[0].mxu0
    %476 = vmatprep.mubr.f32.mxu0 0.0
    %477 = vmatmul.mubr.f32.gmra.mrb[0].mxu0 %v165
    %v478 = vpop.f32.mrb[0].mxu0
    %v479 = vadd.f32 0.0, %v478
    %v480 = vpop.f32.mrb[0].mxu0
    %481 = vmatprep.mubr.f32.mxu0 0.0
    %482 = vmatmul.mubr.f32.gmra.mrb[0].mxu0 %v168
    %v483 = vpop.f32.mrb[0].mxu0
    %v484 = vadd.f32 0.0, %v483
    %v485 = vpop.f32.mrb[0].mxu0
    %486 = vmatprep.mubr.f32.mxu0 0.0
    %487 = vmatmul.mubr.f32.gmra.mrb[0].mxu0 %v171
    %v488 = vpop.f32.mrb[0].mxu0
    %v489 = vadd.f32 0.0, %v488
    %v490 = vpop.f32.mrb[0].mxu0
    %491 = vmatprep.mubr.f32.mxu0 0.0
    %492 = vmatmul.mubr.f32.gmra.mrb[0].mxu0 %v174
    %v493 = vpop.f32.mrb[0].mxu0
    %v494 = vadd.f32 0.0, %v493
    %v495 = vpop.f32.mrb[0].mxu0
    %496 = vmatprep.mubr.f32.mxu0 0.0
    %497 = vmatmul.mubr.f32.gmra.mrb[0].mxu0 %v177
    %v498 = vpop.f32.mrb[0].mxu0
    %v499 = vadd.f32 0.0, %v498
    %v500 = vpop.f32.mrb[0].mxu0
    %501 = vmatprep.mubr.f32.mxu0 0.0
    %502 = vmatmul.mubr.f32.gmra.mrb[0].mxu0 %v180
    %v503 = vpop.f32.mrb[0].mxu0
    %v504 = vadd.f32 0.0, %v503
    %v505 = vpop.f32.mrb[0].mxu0
    %506 = vmatprep.mubr.f32.mxu0 0.0
    %507 = vmatmul.mubr.f32.gmra.mrb[0].mxu0 %v183
    %v508 = vpop.f32.mrb[0].mxu0
    %v509 = vadd.f32 0.0, %v508
    %v510 = vpop.f32.mrb[0].mxu0
    %511 = vmatprep.mubr.f32.mxu0 0.0
    %512 = vmatmul.mubr.f32.gmra.mrb[0].mxu0 %v186
    %v513 = vpop.f32.mrb[0].mxu0
    %v514 = vadd.f32 0.0, %v513
    %v515 = vpop.f32.mrb[0].mxu0
    %516 = vmatprep.mubr.f32.mxu0 0.0
    %517 = vmatmul.mubr.f32.gmra.mrb[0].mxu0 %v189
    %v518 = vpop.f32.mrb[0].mxu0
    %v519 = vadd.f32 0.0, %v518
    %v520 = vpop.f32.mrb[0].mxu0
    %521 = vmatprep.mubr.f32.mxu0 0.0
    %522 = vmatmul.mubr.f32.gmra.mrb[0].mxu0 %v192
    %v523 = vpop.f32.mrb[0].mxu0
    %v524 = vadd.f32 0.0, %v523
    %v525 = vpop.f32.mrb[0].mxu0
    %526 = vmatprep.mubr.f32.mxu0 0.0
    %527 = vmatmul.mubr.f32.gmra.mrb[0].mxu0 %v195
    %v528 = vpop.f32.mrb[0].mxu0
    %v529 = vadd.f32 0.0, %v528
    %v530 = vpop.f32.mrb[0].mxu0
    %531 = vmatprep.mubr.f32.mxu0 0.0
    %532 = vmatmul.mubr.f32.gmra.mrb[0].mxu0 %v198
    %v533 = vpop.f32.mrb[0].mxu0
    %v534 = vadd.f32 0.0, %v533
    %v535 = vpop.f32.mrb[0].mxu0
    %536 = vmatprep.mubr.f32.mxu0 0.0
    %537 = vmatmul.mubr.f32.gmra.mrb[0].mxu0 %v201
    %v538 = vpop.f32.mrb[0].mxu0
    %v539 = vadd.f32 0.0, %v538
    %v540 = vpop.f32.mrb[0].mxu0
    %541 = vmatprep.mubr.f32.mxu0 0.0
    %542 = vmatmul.mubr.f32.gmra.mrb[0].mxu0 %v204
    %v543 = vpop.f32.mrb[0].mxu0
    %v544 = vadd.f32 0.0, %v543
    %v545 = vpop.f32.mrb[0].mxu0
    %546 = vmatprep.mubr.f32.mxu0 0.0
    %547 = vmatmul.mubr.f32.gmra.mrb[0].mxu0 %v207
    %v548 = vpop.f32.mrb[0].mxu0
    %v549 = vadd.f32 0.0, %v548
    %v550 = vpop.f32.mrb[0].mxu0
    %551 = vmatprep.mubr.f32.mxu0 0.0
    %552 = vmatmul.mubr.f32.gmra.mrb[0].mxu0 %v210
    %v553 = vpop.f32.mrb[0].mxu0
    %v554 = vadd.f32 0.0, %v553
    %v555 = vpop.f32.mrb[0].mxu0
    %556 = vmatprep.mubr.f32.mxu0 0.0
    %557 = vmatmul.mubr.f32.gmra.mrb[0].mxu0 %v213
    %v558 = vpop.f32.mrb[0].mxu0
    %v559 = vadd.f32 0.0, %v558
    %v560 = vpop.f32.mrb[0].mxu0
    %561 = vmatprep.mubr.f32.mxu0 0.0
    %562 = vmatmul.mubr.f32.gmra.mrb[0].mxu0 %v216
    %v563 = vpop.f32.mrb[0].mxu0
    %v564 = vadd.f32 0.0, %v563
    %v565 = vpop.f32.mrb[0].mxu0
    %566 = vmatprep.mubr.f32.mxu0 0.0
    %567 = vmatmul.mubr.f32.gmra.mrb[0].mxu0 %v219
    %v568 = vpop.f32.mrb[0].mxu0
    %v569 = vadd.f32 0.0, %v568
    %v570 = vpop.f32.mrb[0].mxu0
    %571 = vmatprep.mubr.f32.mxu0 0.0
    %572 = vmatmul.mubr.f32.gmra.mrb[0].mxu0 %v222
    %v573 = vpop.f32.mrb[0].mxu0
    %v574 = vadd.f32 0.0, %v573
    %v575 = vpop.f32.mrb[0].mxu0
    %576 = vmatprep.mubr.f32.mxu0 0.0
    %577 = vmatmul.mubr.f32.gmra.mrb[0].mxu0 %v225
    %v578 = vpop.f32.mrb[0].mxu0
    %v579 = vadd.f32 0.0, %v578
    %v580 = vpop.f32.mrb[0].mxu0
    %581 = vmatprep.mubr.f32.mxu0 0.0
    %582 = vmatmul.mubr.f32.gmra.mrb[0].mxu0 %v228
    %v583 = vpop.f32.mrb[0].mxu0
    %v584 = vadd.f32 0.0, %v583
    %v585 = vpop.f32.mrb[0].mxu0
    %586 = vmatprep.mubr.f32.mxu0 0.0
    %587 = vmatmul.mubr.f32.gmra.mrb[0].mxu0 %v231
    %v588 = vpop.f32.mrb[0].mxu0
    %v589 = vadd.f32 0.0, %v588
    %v590 = vpop.f32.mrb[0].mxu0
    %591 = vmatprep.mubr.f32.mxu0 0.0
    %592 = vmatmul.mubr.f32.gmra.mrb[0].mxu0 %v234
    %v593 = vpop.f32.mrb[0].mxu0
    %v594 = vadd.f32 0.0, %v593
    %v595 = vpop.f32.mrb[0].mxu0
    %596 = vmatprep.mubr.f32.mxu0 0.0
    %597 = vmatmul.mubr.f32.gmra.mrb[0].mxu0 %v237
    %v598 = vpop.f32.mrb[0].mxu0
    %v599 = vadd.f32 0.0, %v598
    %v600 = vpop.f32.mrb[0].mxu0
    %601 = vmatprep.mubr.f32.mxu0 0.0
    %602 = vmatmul.mubr.f32.gmra.mrb[0].mxu0 %v240
    %v603 = vpop.f32.mrb[0].mxu0
    %v604 = vadd.f32 0.0, %v603
    %v605 = vpop.f32.mrb[0].mxu0
    %606 = vmatprep.mubr.f32.mxu0 0.0
    %607 = vmatmul.mubr.f32.gmra.mrb[0].mxu0 %v243
    %v608 = vpop.f32.mrb[0].mxu0
    %v609 = vadd.f32 0.0, %v608
    %v610 = vpop.f32.mrb[0].mxu0
    %611 = vmatprep.mubr.f32.mxu0 0.0
    %612 = vmatmul.mubr.f32.gmra.mrb[0].mxu0 %v246
    %v613 = vpop.f32.mrb[0].mxu0
    %v614 = vadd.f32 0.0, %v613
    %v615 = vpop.f32.mrb[0].mxu0
    %616 = vmatprep.mubr.f32.mxu0 0.0
    %617 = vmatmul.mubr.f32.gmra.mrb[0].mxu0 %v249
    %v618 = vpop.f32.mrb[0].mxu0
    %v619 = vadd.f32 0.0, %v618
    %v620 = vpop.f32.mrb[0].mxu0
    %621 = vmatprep.mubr.f32.mxu0 0.0
    %622 = vmatmul.mubr.f32.gmra.mrb[0].mxu0 %v252
    %v623 = vpop.f32.mrb[0].mxu0
    %v624 = vadd.f32 0.0, %v623
    %v625 = vpop.f32.mrb[0].mxu0
    %626 = vmatprep.mubr.f32.mxu0 0.0
    %627 = vmatmul.mubr.f32.gmra.mrb[0].mxu0 %v255
    %v628 = vpop.f32.mrb[0].mxu0
    %v629 = vadd.f32 0.0, %v628
    %v630 = vpop.f32.mrb[0].mxu0
    %631 = vmatprep.mubr.f32.mxu0 0.0
    %632 = vmatmul.mubr.f32.gmra.mrb[0].mxu0 %v258
    %v633 = vpop.f32.mrb[0].mxu0
    %v634 = vadd.f32 0.0, %v633
    %v635 = vpop.f32.mrb[0].mxu0
    %636 = vmatprep.mubr.f32.mxu0 0.0
    %637 = vmatmul.mubr.f32.gmra.mrb[0].mxu0 %v261
    %v638 = vpop.f32.mrb[0].mxu0
    %v639 = vadd.f32 0.0, %v638
    %v640 = vpop.f32.mrb[0].mxu0
    %641 = vmatprep.mubr.f32.mxu0 0.0
    %642 = vmatmul.mubr.f32.gmra.mrb[0].mxu0 %v264
    %v643 = vpop.f32.mrb[0].mxu0
    %v644 = vadd.f32 0.0, %v643
    %v645 = vpop.f32.mrb[0].mxu0
    %646 = vmatprep.mubr.f32.mxu0 0.0
    %647 = vmatmul.mubr.f32.gmra.mrb[0].mxu0 %v267
    %v648 = vpop.f32.mrb[0].mxu0
    %v649 = vadd.f32 0.0, %v648
    %v650 = vpop.f32.mrb[0].mxu0
    %651 = vmatprep.mubr.f32.mxu0 0.0
    %652 = vmatmul.mubr.f32.gmra.mrb[0].mxu0 %v270
    %v653 = vpop.f32.mrb[0].mxu0
    %v654 = vadd.f32 0.0, %v653
    %v655 = vpop.f32.mrb[0].mxu0
    %656 = vdwg.mxu0
    %vm657 = vcmask 31744
    %658 = vst.msk [vmem:[%s2] sm:$0xff] %vm657, %v339
    %659 = vst.msk [vmem:[%s2 + $0x8] sm:$0xff] %vm657, %v344
    %660 = vst.msk [vmem:[%s2 + $0x10] sm:$0xff] %vm657, %v349
    %661 = vst.msk [vmem:[%s2 + $0x18] sm:$0xff] %vm657, %v354
    %662 = vst.msk [vmem:[%s2 + $0x20] sm:$0xff] %vm657, %v359
    %663 = vst.msk [vmem:[%s2 + $0x28] sm:$0xff] %vm657, %v364
    %664 = vst.msk [vmem:[%s2 + $0x30] sm:$0xff] %vm657, %v369
    %665 = vst.msk [vmem:[%s2 + $0x38] sm:$0xff] %vm657, %v374
    %666 = vst.msk [vmem:[%s2 + $0x40] sm:$0xff] %vm657, %v379
    %667 = vst.msk [vmem:[%s2 + $0x48] sm:$0xff] %vm657, %v384
    %668 = vst.msk [vmem:[%s2 + $0x50] sm:$0xff] %vm657, %v389
    %669 = vst.msk [vmem:[%s2 + $0x58] sm:$0xff] %vm657, %v394
    %670 = vst.msk [vmem:[%s2 + $0x60] sm:$0xff] %vm657, %v399
    %671 = vst.msk [vmem:[%s2 + $0x68] sm:$0xff] %vm657, %v404
    %672 = vst.msk [vmem:[%s2 + $0x70] sm:$0xff] %vm657, %v409
    %673 = vst.msk [vmem:[%s2 + $0x78] sm:$0xff] %vm657, %v414
    %674 = vst.msk [vmem:[%s2 + $0x80] sm:$0xff] %vm657, %v419
    %675 = vst.msk [vmem:[%s2 + $0x88] sm:$0xff] %vm657, %v424
    %676 = vst.msk [vmem:[%s2 + $0x90] sm:$0xff] %vm657, %v429
    %677 = vst.msk [vmem:[%s2 + $0x98] sm:$0xff] %vm657, %v434
    %678 = vst.msk [vmem:[%s2 + $0xa0] sm:$0xff] %vm657, %v439
    %679 = vst.msk [vmem:[%s2 + $0xa8] sm:$0xff] %vm657, %v444
    %680 = vst.msk [vmem:[%s2 + $0xb0] sm:$0xff] %vm657, %v449
    %681 = vst.msk [vmem:[%s2 + $0xb8] sm:$0xff] %vm657, %v454
    %682 = vst.msk [vmem:[%s2 + $0xc0] sm:$0xff] %vm657, %v459
    %683 = vst.msk [vmem:[%s2 + $0xc8] sm:$0xff] %vm657, %v464
    %684 = vst.msk [vmem:[%s2 + $0xd0] sm:$0xff] %vm657, %v469
    %685 = vst.msk [vmem:[%s2 + $0xd8] sm:$0xff] %vm657, %v474
    %686 = vst.msk [vmem:[%s2 + $0xe0] sm:$0xff] %vm657, %v479
    %687 = vst.msk [vmem:[%s2 + $0xe8] sm:$0xff] %vm657, %v484
    %688 = vst.msk [vmem:[%s2 + $0xf0] sm:$0xff] %vm657, %v489
    %689 = vst.msk [vmem:[%s2 + $0xf8] sm:$0xff] %vm657, %v494
    %690 = vst.msk [vmem:[%s2 + $0x100] sm:$0xff] %vm657, %v499
    %691 = vst.msk [vmem:[%s2 + $0x108] sm:$0xff] %vm657, %v504
    %692 = vst.msk [vmem:[%s2 + $0x110] sm:$0xff] %vm657, %v509
    %693 = vst.msk [vmem:[%s2 + $0x118] sm:$0xff] %vm657, %v514
    %694 = vst.msk [vmem:[%s2 + $0x120] sm:$0xff] %vm657, %v519
    %695 = vst.msk [vmem:[%s2 + $0x128] sm:$0xff] %vm657, %v524
    %696 = vst.msk [vmem:[%s2 + $0x130] sm:$0xff] %vm657, %v529
    %697 = vst.msk [vmem:[%s2 + $0x138] sm:$0xff] %vm657, %v534
    %698 = vst.msk [vmem:[%s2 + $0x140] sm:$0xff] %vm657, %v539
    %699 = vst.msk [vmem:[%s2 + $0x148] sm:$0xff] %vm657, %v544
    %700 = vst.msk [vmem:[%s2 + $0x150] sm:$0xff] %vm657, %v549
    %701 = vst.msk [vmem:[%s2 + $0x158] sm:$0xff] %vm657, %v554
    %702 = vst.msk [vmem:[%s2 + $0x160] sm:$0xff] %vm657, %v559
    %703 = vst.msk [vmem:[%s2 + $0x168] sm:$0xff] %vm657, %v564
    %704 = vst.msk [vmem:[%s2 + $0x170] sm:$0xff] %vm657, %v569
    %705 = vst.msk [vmem:[%s2 + $0x178] sm:$0xff] %vm657, %v574
    %706 = vst.msk [vmem:[%s2 + $0x180] sm:$0xff] %vm657, %v579
    %707 = vst.msk [vmem:[%s2 + $0x188] sm:$0xff] %vm657, %v584
    %708 = vst.msk [vmem:[%s2 + $0x190] sm:$0xff] %vm657, %v589
    %709 = vst.msk [vmem:[%s2 + $0x198] sm:$0xff] %vm657, %v594
    %710 = vst.msk [vmem:[%s2 + $0x1a0] sm:$0xff] %vm657, %v599
    %711 = vst.msk [vmem:[%s2 + $0x1a8] sm:$0xff] %vm657, %v604
    %712 = vst.msk [vmem:[%s2 + $0x1b0] sm:$0xff] %vm657, %v609
    %713 = vst.msk [vmem:[%s2 + $0x1b8] sm:$0xff] %vm657, %v614
    %714 = vst.msk [vmem:[%s2 + $0x1c0] sm:$0xff] %vm657, %v619
    %715 = vst.msk [vmem:[%s2 + $0x1c8] sm:$0xff] %vm657, %v624
    %716 = vst.msk [vmem:[%s2 + $0x1d0] sm:$0xff] %vm657, %v629
    %717 = vst.msk [vmem:[%s2 + $0x1d8] sm:$0xff] %vm657, %v634
    %718 = vst.msk [vmem:[%s2 + $0x1e0] sm:$0xff] %vm657, %v639
    %719 = vst.msk [vmem:[%s2 + $0x1e8] sm:$0xff] %vm657, %v644
    %720 = vst.msk [vmem:[%s2 + $0x1f0] sm:$0xff] %vm657, %v649
    %721 = vst.msk [vmem:[%s2 + $0x1f8] sm:$0xff] %vm657, %v654
    %v722 = vsel %vm657, %v339, 0.0
    %v723 = vsel %vm657, %v344, 0.0
    %v724 = vadd.f32 %v722, %v723
    %v725 = vsel %vm657, %v349, 0.0
    %v726 = vadd.f32 %v724, %v725
    %v727 = vsel %vm657, %v354, 0.0
    %v728 = vadd.f32 %v726, %v727
    %v729 = vsel %vm657, %v359, 0.0
    %v730 = vadd.f32 %v728, %v729
    %v731 = vsel %vm657, %v364, 0.0
    %v732 = vadd.f32 %v730, %v731
    %v733 = vsel %vm657, %v369, 0.0
    %v734 = vadd.f32 %v732, %v733
    %v735 = vsel %vm657, %v374, 0.0
    %v736 = vadd.f32 %v734, %v735
    %v737 = vsel %vm657, %v379, 0.0
    %v738 = vadd.f32 %v736, %v737
    %v739 = vsel %vm657, %v384, 0.0
    %v740 = vadd.f32 %v738, %v739
    %v741 = vsel %vm657, %v389, 0.0
    %v742 = vadd.f32 %v740, %v741
    %v743 = vsel %vm657, %v394, 0.0
    %v744 = vadd.f32 %v742, %v743
    %v745 = vsel %vm657, %v399, 0.0
    %v746 = vadd.f32 %v744, %v745
    %v747 = vsel %vm657, %v404, 0.0
    %v748 = vadd.f32 %v746, %v747
    %v749 = vsel %vm657, %v409, 0.0
    %v750 = vadd.f32 %v748, %v749
    %v751 = vsel %vm657, %v414, 0.0
    %v752 = vadd.f32 %v750, %v751
    %v753 = vsel %vm657, %v419, 0.0
    %v754 = vadd.f32 %v752, %v753
    %v755 = vsel %vm657, %v424, 0.0
    %v756 = vadd.f32 %v754, %v755
    %v757 = vsel %vm657, %v429, 0.0
    %v758 = vadd.f32 %v756, %v757
    %v759 = vsel %vm657, %v434, 0.0
    %v760 = vadd.f32 %v758, %v759
    %v761 = vsel %vm657, %v439, 0.0
    %v762 = vadd.f32 %v760, %v761
    %v763 = vsel %vm657, %v444, 0.0
    %v764 = vadd.f32 %v762, %v763
    %v765 = vsel %vm657, %v449, 0.0
    %v766 = vadd.f32 %v764, %v765
    %v767 = vsel %vm657, %v454, 0.0
    %v768 = vadd.f32 %v766, %v767
    %v769 = vsel %vm657, %v459, 0.0
    %v770 = vadd.f32 %v768, %v769
    %v771 = vsel %vm657, %v464, 0.0
    %v772 = vadd.f32 %v770, %v771
    %v773 = vsel %vm657, %v469, 0.0
    %v774 = vadd.f32 %v772, %v773
    %v775 = vsel %vm657, %v474, 0.0
    %v776 = vadd.f32 %v774, %v775
    %v777 = vsel %vm657, %v479, 0.0
    %v778 = vadd.f32 %v776, %v777
    %v779 = vsel %vm657, %v484, 0.0
    %v780 = vadd.f32 %v778, %v779
    %v781 = vsel %vm657, %v489, 0.0
    %v782 = vadd.f32 %v780, %v781
    %v783 = vsel %vm657, %v494, 0.0
    %v784 = vadd.f32 %v782, %v783
    %v785 = vsel %vm657, %v499, 0.0
    %v786 = vadd.f32 %v784, %v785
    %v787 = vsel %vm657, %v504, 0.0
    %v788 = vadd.f32 %v786, %v787
    %v789 = vsel %vm657, %v509, 0.0
    %v790 = vadd.f32 %v788, %v789
    %v791 = vsel %vm657, %v514, 0.0
    %v792 = vadd.f32 %v790, %v791
    %v793 = vsel %vm657, %v519, 0.0
    %v794 = vadd.f32 %v792, %v793
    %v795 = vsel %vm657, %v524, 0.0
    %v796 = vadd.f32 %v794, %v795
    %v797 = vsel %vm657, %v529, 0.0
    %v798 = vadd.f32 %v796, %v797
    %v799 = vsel %vm657, %v534, 0.0
    %v800 = vadd.f32 %v798, %v799
    %v801 = vsel %vm657, %v539, 0.0
    %v802 = vadd.f32 %v800, %v801
    %v803 = vsel %vm657, %v544, 0.0
    %v804 = vadd.f32 %v802, %v803
    %v805 = vsel %vm657, %v549, 0.0
    %v806 = vadd.f32 %v804, %v805
    %v807 = vsel %vm657, %v554, 0.0
    %v808 = vadd.f32 %v806, %v807
    %v809 = vsel %vm657, %v559, 0.0
    %v810 = vadd.f32 %v808, %v809
    %v811 = vsel %vm657, %v564, 0.0
    %v812 = vadd.f32 %v810, %v811
    %v813 = vsel %vm657, %v569, 0.0
    %v814 = vadd.f32 %v812, %v813
    %v815 = vsel %vm657, %v574, 0.0
    %v816 = vadd.f32 %v814, %v815
    %v817 = vsel %vm657, %v579, 0.0
    %v818 = vadd.f32 %v816, %v817
    %v819 = vsel %vm657, %v584, 0.0
    %v820 = vadd.f32 %v818, %v819
    %v821 = vsel %vm657, %v589, 0.0
    %v822 = vadd.f32 %v820, %v821
    %v823 = vsel %vm657, %v594, 0.0
    %v824 = vadd.f32 %v822, %v823
    %v825 = vsel %vm657, %v599, 0.0
    %v826 = vadd.f32 %v824, %v825
    %v827 = vsel %vm657, %v604, 0.0
    %v828 = vadd.f32 %v826, %v827
    %v829 = vsel %vm657, %v609, 0.0
    %v830 = vadd.f32 %v828, %v829
    %v831 = vsel %vm657, %v614, 0.0
    %v832 = vadd.f32 %v830, %v831
    %v833 = vsel %vm657, %v619, 0.0
    %v834 = vadd.f32 %v832, %v833
    %v835 = vsel %vm657, %v624, 0.0
    %v836 = vadd.f32 %v834, %v835
    %v837 = vsel %vm657, %v629, 0.0
    %v838 = vadd.f32 %v836, %v837
    %v839 = vsel %vm657, %v634, 0.0
    %v840 = vadd.f32 %v838, %v839
    %v841 = vsel %vm657, %v639, 0.0
    %v842 = vadd.f32 %v840, %v841
    %v843 = vsel %vm657, %v644, 0.0
    %v844 = vadd.f32 %v842, %v843
    %v845 = vsel %vm657, %v649, 0.0
    %v846 = vadd.f32 %v844, %v845
    %v847 = vsel %vm657, %v654, 0.0
    %v848 = vadd.f32 %v846, %v847
    %v849 = vrot.slane %v848, 4
    %v850 = vadd.f32 %v848, %v849
    %v851 = vrot.slane %v850, 2
    %v852 = vadd.f32 %v850, %v851
    %v853 = vrot.slane %v852, 1
    %v854 = vadd.f32 %v852, %v853
    %vm855 = vcmask 24576
    %856 = vst.msk [vmem:[#allocation2] sm:$0x1] %vm855, %v854
    %v857 = vmul.f32 %v339, %v339
    %v858 = vmul.f32 %v344, %v344
    %v859 = vmul.f32 %v349, %v349
    %v860 = vmul.f32 %v354, %v354
    %v861 = vmul.f32 %v359, %v359
    %v862 = vmul.f32 %v364, %v364
    %v863 = vmul.f32 %v369, %v369
    %v864 = vmul.f32 %v374, %v374
    %v865 = vmul.f32 %v379, %v379
    %v866 = vmul.f32 %v384, %v384
    %v867 = vmul.f32 %v389, %v389
    %v868 = vmul.f32 %v394, %v394
    %v869 = vmul.f32 %v399, %v399
    %v870 = vmul.f32 %v404, %v404
    %v871 = vmul.f32 %v409, %v409
    %v872 = vmul.f32 %v414, %v414
    %v873 = vmul.f32 %v419, %v419
    %v874 = vmul.f32 %v424, %v424
    %v875 = vmul.f32 %v429, %v429
    %v876 = vmul.f32 %v434, %v434
    %v877 = vmul.f32 %v439, %v439
    %v878 = vmul.f32 %v444, %v444
    %v879 = vmul.f32 %v449, %v449
    %v880 = vmul.f32 %v454, %v454
    %v881 = vmul.f32 %v459, %v459
    %v882 = vmul.f32 %v464, %v464
    %v883 = vmul.f32 %v469, %v469
    %v884 = vmul.f32 %v474, %v474
    %v885 = vmul.f32 %v479, %v479
    %v886 = vmul.f32 %v484, %v484
    %v887 = vmul.f32 %v489, %v489
    %v888 = vmul.f32 %v494, %v494
    %v889 = vmul.f32 %v499, %v499
    %v890 = vmul.f32 %v504, %v504
    %v891 = vmul.f32 %v509, %v509
    %v892 = vmul.f32 %v514, %v514
    %v893 = vmul.f32 %v519, %v519
    %v894 = vmul.f32 %v524, %v524
    %v895 = vmul.f32 %v529, %v529
    %v896 = vmul.f32 %v534, %v534
    %v897 = vmul.f32 %v539, %v539
    %v898 = vmul.f32 %v544, %v544
    %v899 = vmul.f32 %v549, %v549
    %v900 = vmul.f32 %v554, %v554
    %v901 = vmul.f32 %v559, %v559
    %v902 = vmul.f32 %v564, %v564
    %v903 = vmul.f32 %v569, %v569
    %v904 = vmul.f32 %v574, %v574
    %v905 = vmul.f32 %v579, %v579
    %v906 = vmul.f32 %v584, %v584
    %v907 = vmul.f32 %v589, %v589
    %v908 = vmul.f32 %v594, %v594
    %v909 = vmul.f32 %v599, %v599
    %v910 = vmul.f32 %v604, %v604
    %v911 = vmul.f32 %v609, %v609
    %v912 = vmul.f32 %v614, %v614
    %v913 = vmul.f32 %v619, %v619
    %v914 = vmul.f32 %v624, %v624
    %v915 = vmul.f32 %v629, %v629
    %v916 = vmul.f32 %v634, %v634
    %v917 = vmul.f32 %v639, %v639
    %v918 = vmul.f32 %v644, %v644
    %v919 = vmul.f32 %v649, %v649
    %v920 = vmul.f32 %v654, %v654
    %v921 = vsel %vm657, %v857, 0.0
    %v922 = vsel %vm657, %v858, 0.0
    %v923 = vadd.f32 %v921, %v922
    %v924 = vsel %vm657, %v859, 0.0
    %v925 = vadd.f32 %v923, %v924
    %v926 = vsel %vm657, %v860, 0.0
    %v927 = vadd.f32 %v925, %v926
    %v928 = vsel %vm657, %v861, 0.0
    %v929 = vadd.f32 %v927, %v928
    %v930 = vsel %vm657, %v862, 0.0
    %v931 = vadd.f32 %v929, %v930
    %v932 = vsel %vm657, %v863, 0.0
    %v933 = vadd.f32 %v931, %v932
    %v934 = vsel %vm657, %v864, 0.0
    %v935 = vadd.f32 %v933, %v934
    %v936 = vsel %vm657, %v865, 0.0
    %v937 = vadd.f32 %v935, %v936
    %v938 = vsel %vm657, %v866, 0.0
    %v939 = vadd.f32 %v937, %v938
    %v940 = vsel %vm657, %v867, 0.0
    %v941 = vadd.f32 %v939, %v940
    %v942 = vsel %vm657, %v868, 0.0
    %v943 = vadd.f32 %v941, %v942
    %v944 = vsel %vm657, %v869, 0.0
    %v945 = vadd.f32 %v943, %v944
    %v946 = vsel %vm657, %v870, 0.0
    %v947 = vadd.f32 %v945, %v946
    %v948 = vsel %vm657, %v871, 0.0
    %v949 = vadd.f32 %v947, %v948
    %v950 = vsel %vm657, %v872, 0.0
    %v951 = vadd.f32 %v949, %v950
    %v952 = vsel %vm657, %v873, 0.0
    %v953 = vadd.f32 %v951, %v952
    %v954 = vsel %vm657, %v874, 0.0
    %v955 = vadd.f32 %v953, %v954
    %v956 = vsel %vm657, %v875, 0.0
    %v957 = vadd.f32 %v955, %v956
    %v958 = vsel %vm657, %v876, 0.0
    %v959 = vadd.f32 %v957, %v958
    %v960 = vsel %vm657, %v877, 0.0
    %v961 = vadd.f32 %v959, %v960
    %v962 = vsel %vm657, %v878, 0.0
    %v963 = vadd.f32 %v961, %v962
    %v964 = vsel %vm657, %v879, 0.0
    %v965 = vadd.f32 %v963, %v964
    %v966 = vsel %vm657, %v880, 0.0
    %v967 = vadd.f32 %v965, %v966
    %v968 = vsel %vm657, %v881, 0.0
    %v969 = vadd.f32 %v967, %v968
    %v970 = vsel %vm657, %v882, 0.0
    %v971 = vadd.f32 %v969, %v970
    %v972 = vsel %vm657, %v883, 0.0
    %v973 = vadd.f32 %v971, %v972
    %v974 = vsel %vm657, %v884, 0.0
    %v975 = vadd.f32 %v973, %v974
    %v976 = vsel %vm657, %v885, 0.0
    %v977 = vadd.f32 %v975, %v976
    %v978 = vsel %vm657, %v886, 0.0
    %v979 = vadd.f32 %v977, %v978
    %v980 = vsel %vm657, %v887, 0.0
    %v981 = vadd.f32 %v979, %v980
    %v982 = vsel %vm657, %v888, 0.0
    %v983 = vadd.f32 %v981, %v982
    %v984 = vsel %vm657, %v889, 0.0
    %v985 = vadd.f32 %v983, %v984
    %v986 = vsel %vm657, %v890, 0.0
    %v987 = vadd.f32 %v985, %v986
    %v988 = vsel %vm657, %v891, 0.0
    %v989 = vadd.f32 %v987, %v988
    %v990 = vsel %vm657, %v892, 0.0
    %v991 = vadd.f32 %v989, %v990
    %v992 = vsel %vm657, %v893, 0.0
    %v993 = vadd.f32 %v991, %v992
    %v994 = vsel %vm657, %v894, 0.0
    %v995 = vadd.f32 %v993, %v994
    %v996 = vsel %vm657, %v895, 0.0
    %v997 = vadd.f32 %v995, %v996
    %v998 = vsel %vm657, %v896, 0.0
    %v999 = vadd.f32 %v997, %v998
    %v1000 = vsel %vm657, %v897, 0.0
    %v1001 = vadd.f32 %v999, %v1000
    %v1002 = vsel %vm657, %v898, 0.0
    %v1003 = vadd.f32 %v1001, %v1002
    %v1004 = vsel %vm657, %v899, 0.0
    %v1005 = vadd.f32 %v1003, %v1004
    %v1006 = vsel %vm657, %v900, 0.0
    %v1007 = vadd.f32 %v1005, %v1006
    %v1008 = vsel %vm657, %v901, 0.0
    %v1009 = vadd.f32 %v1007, %v1008
    %v1010 = vsel %vm657, %v902, 0.0
    %v1011 = vadd.f32 %v1009, %v1010
    %v1012 = vsel %vm657, %v903, 0.0
    %v1013 = vadd.f32 %v1011, %v1012
    %v1014 = vsel %vm657, %v904, 0.0
    %v1015 = vadd.f32 %v1013, %v1014
    %v1016 = vsel %vm657, %v905, 0.0
    %v1017 = vadd.f32 %v1015, %v1016
    %v1018 = vsel %vm657, %v906, 0.0
    %v1019 = vadd.f32 %v1017, %v1018
    %v1020 = vsel %vm657, %v907, 0.0
    %v1021 = vadd.f32 %v1019, %v1020
    %v1022 = vsel %vm657, %v908, 0.0
    %v1023 = vadd.f32 %v1021, %v1022
    %v1024 = vsel %vm657, %v909, 0.0
    %v1025 = vadd.f32 %v1023, %v1024
    %v1026 = vsel %vm657, %v910, 0.0
    %v1027 = vadd.f32 %v1025, %v1026
    %v1028 = vsel %vm657, %v911, 0.0
    %v1029 = vadd.f32 %v1027, %v1028
    %v1030 = vsel %vm657, %v912, 0.0
    %v1031 = vadd.f32 %v1029, %v1030
    %v1032 = vsel %vm657, %v913, 0.0
    %v1033 = vadd.f32 %v1031, %v1032
    %v1034 = vsel %vm657, %v914, 0.0
    %v1035 = vadd.f32 %v1033, %v1034
    %v1036 = vsel %vm657, %v915, 0.0
    %v1037 = vadd.f32 %v1035, %v1036
    %v1038 = vsel %vm657, %v916, 0.0
    %v1039 = vadd.f32 %v1037, %v1038
    %v1040 = vsel %vm657, %v917, 0.0
    %v1041 = vadd.f32 %v1039, %v1040
    %v1042 = vsel %vm657, %v918, 0.0
    %v1043 = vadd.f32 %v1041, %v1042
    %v1044 = vsel %vm657, %v919, 0.0
    %v1045 = vadd.f32 %v1043, %v1044
    %v1046 = vsel %vm657, %v920, 0.0
    %v1047 = vadd.f32 %v1045, %v1046
    %v1048 = vrot.slane %v1047, 4
    %v1049 = vadd.f32 %v1047, %v1048
    %v1050 = vrot.slane %v1049, 2
    %v1051 = vadd.f32 %v1049, %v1050
    %v1052 = vrot.slane %v1051, 1
    %v1053 = vadd.f32 %v1051, %v1052
    %1054 = vst.msk [vmem:[#allocation2 + $0x1] sm:$0x1] %vm855, %v1053
    // Predicated region
    $region10: #{tpu_custom_call.1} parent=1 // pred_check
      _
    $region11: #{tpu_custom_call.1} parent=1 // pred_check_branch
      %1056 = sbr.rel (0) target = $region13
    $region12: #{tpu_custom_call.1} parent=1 // pred_region
      _
    $region13: #{tpu_custom_call.1} parent=1 // pred_fallthru
      _
    // Predicated region
    $region14: #{tpu_custom_call.1} parent=1 // pred_check
      _
    $region15: #{tpu_custom_call.1} parent=1 // pred_check_branch
      %1058 = sbr.rel (0) target = $region17
    $region16: #{tpu_custom_call.1} parent=1 // pred_region
      %s1060 = ssub.s32 32, 32
      %1061 = vsyncadd [#allocation3], %s1060
      %s1063 = sshll.u32 [#allocation2], 4
      %s1064 = int_to_ptr.vmem [resolvable:$true] %s1063
      %1066 = dma.vmem_to_hbm [thread:$0]  %s1064, 32, %s3, [#allocation3]
    $region17: #{tpu_custom_call.1} parent=1 // pred_fallthru
      _
    // Predicated region
    $region18: #{tpu_custom_call.1} parent=1 // pred_check
      _
    $region19: #{tpu_custom_call.1} parent=1 // pred_check_branch
      %1068 = sbr.rel (0) target = $region21
    $region20: #{tpu_custom_call.1} parent=1 // pred_region
      _
    $region21: #{tpu_custom_call.1} parent=1 // pred_fallthru
      _
    // Predicated region
    $region22: #{tpu_custom_call.1} parent=1 // pred_check
      _
    $region23: #{tpu_custom_call.1} parent=1 // pred_check_branch
      %1070 = sbr.rel (0) target = $region25
    $region24: #{tpu_custom_call.1} parent=1 // pred_region
      %1071 = dma.done [#allocation3], 32
    $region25: #{tpu_custom_call.1} parent=1 // pred_fallthru
      _
    %1072 = vsyncpa [#allocation3], 1

</llo_original>
